<compile_context>
chip_gen: v6e
topology: v6e:2x2x1
jax: 0.10.0
libtpu: 0.0.40
codegen_flags: <defaults>
</compile_context>

<pallas_src>
import jax
import jax.numpy as jnp
from jax import lax
from jax.experimental import pallas as pl
from jax.experimental.pallas import tpu as pltpu


def _round_up(x, m):
    return ((x + m - 1) // m) * m


def _row_cosine_kernel(q_ref, a_ref, cos_ref, dot_acc, qsq_acc, asq_acc):
    """Accumulate per-row dot / |q|^2 / |a|^2 across the D (reduction) grid
    axis; finalize cosine similarity at the last reduction step."""
    k = pl.program_id(1)

    @pl.when(k == 0)
    def _init():
        dot_acc[...] = jnp.zeros_like(dot_acc)
        qsq_acc[...] = jnp.zeros_like(qsq_acc)
        asq_acc[...] = jnp.zeros_like(asq_acc)

    # Tiles arrive in the input's native dtype; cast per tile, accumulate f32.
    q = q_ref[...].astype(jnp.float32)          # (TB, TD)
    a = a_ref[...].astype(jnp.float32)          # (TB, TD)
    dot_acc[...] += jnp.sum(q * a, axis=-1, keepdims=True)
    qsq_acc[...] += jnp.sum(q * q, axis=-1, keepdims=True)
    asq_acc[...] += jnp.sum(a * a, axis=-1, keepdims=True)

    @pl.when(k == pl.num_programs(1) - 1)
    def _finalize():
        # cos = dot / (max(|q|, eps) * max(|a|, eps)), with eps = 1e-8 like
        # torch.cosine_similarity, expressed as one fused rsqrt:
        #   max(sqrt(x), eps) == sqrt(max(x, eps^2))
        eps_sq = jnp.float32(1e-16)
        denom_sq = (jnp.maximum(qsq_acc[...], eps_sq) *
                    jnp.maximum(asq_acc[...], eps_sq))
        cos_ref[...] = dot_acc[...] * lax.rsqrt(denom_sq)


def _row_cosine(q2, a2, *, tb_target=256, td_target=2048):
    """Per-row cosine similarity of two (B, D) arrays via a tiled Pallas kernel.

    Returns a float32 vector of shape (B,).
    """
    B, D = q2.shape

    # Tile sizing: lane-dense reduction tiles (multiple of 128), batch tiles
    # multiple of 8; targets chosen so 2 inputs x 2 pipeline buffers stay well
    # under the scoped VMEM limit on every generation (incl. v7x's 64 MiB).
    if B <= tb_target:
        tb = _round_up(B, 8)
        bp = tb
    else:
        tb = tb_target
        bp = _round_up(B, tb)
    if D <= td_target:
        td = _round_up(D, 128)
        dp = td
    else:
        td = td_target
        dp = _round_up(D, td)

    # Zero-pad: zeros contribute nothing to dot / squared-norm accumulators,
    # and padded rows yield cos == 0 which is sliced off below.
    if (bp, dp) != (B, D):
        q2 = jnp.pad(q2, ((0, bp - B), (0, dp - D)))
        a2 = jnp.pad(a2, ((0, bp - B), (0, dp - D)))

    # Size the scoped VMEM limit to the actual tile footprint (+ headroom),
    # capped so it stays valid on v7x (64 MiB physical per TensorCore).
    itemsize = jnp.dtype(q2.dtype).itemsize
    in_bytes = 2 * 2 * tb * td * itemsize            # 2 inputs x 2 buffers
    scratch_bytes = (3 + 2) * tb * 128 * 4           # accumulators + out bufs (lane-padded)
    vmem_limit = min(in_bytes + scratch_bytes + (8 << 20), 48 << 20)

    grid = (bp // tb, dp // td)
    cos = pl.pallas_call(
        _row_cosine_kernel,
        out_shape=jax.ShapeDtypeStruct((bp, 1), jnp.float32),
        grid=grid,
        in_specs=[
            pl.BlockSpec((tb, td), lambda i, k: (i, k)),
            pl.BlockSpec((tb, td), lambda i, k: (i, k)),
        ],
        out_specs=pl.BlockSpec((tb, 1), lambda i, k: (i, 0)),
        scratch_shapes=[
            pltpu.VMEM((tb, 1), jnp.float32),   # dot accumulator
            pltpu.VMEM((tb, 1), jnp.float32),   # |q|^2 accumulator
            pltpu.VMEM((tb, 1), jnp.float32),   # |a|^2 accumulator
        ],
        compiler_params=pltpu.CompilerParams(
            dimension_semantics=("parallel", "arbitrary"),
            vmem_limit_bytes=vmem_limit,
        ),
    )(q2, a2)
    return cos[:B, 0]


def cosim_loss(ques, ans, label, margin):
    """ques, ans: (B, ...) arrays; label: (B,) or (B,1) of +/-1; margin: scalar."""
    B = ques.shape[0]
    # Stream native dtype into the kernel (no wrapper upcast -> half the HBM
    # traffic for bf16 inputs); the kernel casts per tile.
    q2 = ques.reshape(B, -1)
    a2 = ans.reshape(B, -1)

    cos = _row_cosine(q2, a2)                        # (B,) float32

    # O(B) epilogue in plain JAX (cheap; keeps the kernel's batch axis fully
    # parallel across TensorCores instead of carrying a scalar accumulator).
    lab = jnp.asarray(label, jnp.float32).reshape(B)
    false_mask = (lab == -1.0).astype(jnp.float32)
    true_mask = (lab == 1.0).astype(jnp.float32)
    # TODO(synk): PyTorch spins forever ("while count == 0: continue") when a
    # mini-batch has only one label class; no kernel equivalent -- the caller
    # must guarantee both classes are present (otherwise this divides by zero).
    false_ave = jnp.sum(cos * false_mask) / jnp.sum(false_mask)
    true_ave = jnp.sum(cos * true_mask) / jnp.sum(true_mask)
    margin = jnp.asarray(margin, jnp.float32)
    return jnp.maximum(jnp.float32(0.0), margin - true_ave + false_ave)


def cosim_loss_ref(ques, ans, label, margin):
    """Pure-JAX reference for sanity checking."""
    B = ques.shape[0]
    q = ques.reshape(B, -1).astype(jnp.float32)
    a = ans.reshape(B, -1).astype(jnp.float32)
    lab = jnp.asarray(label, jnp.float32).reshape(B)
    eps = 1e-8
    dot = jnp.sum(q * a, axis=-1)
    qn = jnp.sqrt(jnp.sum(q * q, axis=-1))
    an = jnp.sqrt(jnp.sum(a * a, axis=-1))
    cos = dot / (jnp.maximum(qn, eps) * jnp.maximum(an, eps))
    fm = (lab == -1.0).astype(jnp.float32)
    tm = (lab == 1.0).astype(jnp.float32)
    false_ave = jnp.sum(cos * fm) / jnp.sum(fm)
    true_ave = jnp.sum(cos * tm) / jnp.sum(tm)
    return jnp.maximum(0.0, jnp.asarray(margin, jnp.float32) - true_ave + false_ave)


if __name__ == "__main__":
    key = jax.random.PRNGKey(0)
    k1, k2 = jax.random.split(key)

    B, C, S = 8, 4, 8  # each sample's feature is (C, S), flattened to D = 32
    ques = jax.random.normal(k1, (B, C, S), dtype=jnp.float32)
    ans = jax.random.normal(k2, (B, C, S), dtype=jnp.float32)
    # Deterministic labels: alternate -1 / +1 so both classes are present.
    label = jnp.array([-1.0, 1.0] * (B // 2), dtype=jnp.float32).reshape(B, 1)
    margin = 0.5

    # f32 path (exact check against the reference).
    loss = cosim_loss(ques, ans, label, margin)
    jax.block_until_ready(loss)
    ref = cosim_loss_ref(ques, ans, label, margin)
    assert jnp.allclose(loss, ref, atol=1e-5, rtol=1e-5), (loss, ref)

    # bf16 path (exercises native-dtype streaming; kernel casts per tile).
    ques_bf = ques.astype(jnp.bfloat16)
    ans_bf = ans.astype(jnp.bfloat16)
    loss_bf = cosim_loss(ques_bf, ans_bf, label, margin)
    jax.block_until_ready(loss_bf)
    ref_bf = cosim_loss_ref(ques_bf, ans_bf, label, margin)
    assert jnp.allclose(loss_bf, ref_bf, atol=1e-3, rtol=1e-3), (loss_bf, ref_bf)

    print("KERNEL_OK")
</pallas_src>

<mosaic_0001>
module attributes {stable_mosaic.version = 11 : i64} {
  func.func @_row_cosine_kernel(%arg0: i32, %arg1: i32, %arg2: memref<8x128xf32, #tpu.memory_space<vmem>>, %arg3: memref<8x128xf32, #tpu.memory_space<vmem>>, %arg4: memref<8x1xf32, #tpu.memory_space<vmem>>, %arg5: memref<8x1xf32, #tpu.memory_space<vmem>>, %arg6: memref<8x1xf32, #tpu.memory_space<vmem>>, %arg7: memref<8x1xf32, #tpu.memory_space<vmem>>) attributes {dimension_semantics = [#tpu.dimension_semantics<parallel>, #tpu.dimension_semantics<arbitrary>], iteration_bounds = array<i64: 1, 1>, scalar_prefetch = 0 : i64, scratch_operands = 3 : i64, tpu.core_type = #tpu.core_type<tc>, window_params = [{transform_indices = @transform_0, window_bounds = array<i64: 8, 128>}, {transform_indices = @transform_1, window_bounds = array<i64: 8, 128>}, {transform_indices = @transform_2, window_bounds = array<i64: 8, 1>}]} {
    %c0_i32 = arith.constant 0 : i32
    %0 = arith.cmpi eq, %arg1, %c0_i32 : i32
    %1 = arith.extui %0 : i1 to i32
    %c0_i32_0 = arith.constant 0 : i32
    %2 = arith.cmpi ne, %1, %c0_i32_0 : i32
    scf.if %2 {
      %cst_20 = arith.constant 0.000000e+00 : f32
      %26 = vector.broadcast %cst_20 : f32 to vector<8x1xf32>
      %c0_21 = arith.constant 0 : index
      %c0_22 = arith.constant 0 : index
      %27 = vector.load %arg5[%c0_21, %c0_22] : memref<8x1xf32, #tpu.memory_space<vmem>>, vector<8x1xf32>
      tpu.vector_store %arg5[%c0_21, %c0_22], %26 {strides = array<i32>} : memref<8x1xf32, #tpu.memory_space<vmem>>, vector<8x1xf32>,
      %cst_23 = arith.constant 0.000000e+00 : f32
      %28 = vector.broadcast %cst_23 : f32 to vector<8x1xf32>
      %c0_24 = arith.constant 0 : index
      %c0_25 = arith.constant 0 : index
      %29 = vector.load %arg6[%c0_24, %c0_25] : memref<8x1xf32, #tpu.memory_space<vmem>>, vector<8x1xf32>
      tpu.vector_store %arg6[%c0_24, %c0_25], %28 {strides = array<i32>} : memref<8x1xf32, #tpu.memory_space<vmem>>, vector<8x1xf32>,
      %cst_26 = arith.constant 0.000000e+00 : f32
      %30 = vector.broadcast %cst_26 : f32 to vector<8x1xf32>
      %c0_27 = arith.constant 0 : index
      %c0_28 = arith.constant 0 : index
      %31 = vector.load %arg7[%c0_27, %c0_28] : memref<8x1xf32, #tpu.memory_space<vmem>>, vector<8x1xf32>
      tpu.vector_store %arg7[%c0_27, %c0_28], %30 {strides = array<i32>} : memref<8x1xf32, #tpu.memory_space<vmem>>, vector<8x1xf32>,
    } else {
    }
    %c0 = arith.constant 0 : index
    %c0_1 = arith.constant 0 : index
    %3 = vector.load %arg2[%c0, %c0_1] : memref<8x128xf32, #tpu.memory_space<vmem>>, vector<8x128xf32>
    %c0_2 = arith.constant 0 : index
    %c0_3 = arith.constant 0 : index
    %4 = vector.load %arg3[%c0_2, %c0_3] : memref<8x128xf32, #tpu.memory_space<vmem>>, vector<8x128xf32>
    %c0_4 = arith.constant 0 : index
    %c0_5 = arith.constant 0 : index
    %5 = vector.load %arg5[%c0_4, %c0_5] : memref<8x1xf32, #tpu.memory_space<vmem>>, vector<8x1xf32>
    %6 = arith.mulf %3, %4 : vector<8x128xf32>
    %cst = arith.constant dense<0.000000e+00> : vector<8xf32>
    %7 = vector.multi_reduction <add>, %6, %cst [1] : vector<8x128xf32> to vector<8xf32>
    %8 = vector.shape_cast %7 : vector<8xf32> to vector<8x1xf32>
    %9 = arith.addf %5, %8 : vector<8x1xf32>
    %c0_6 = arith.constant 0 : index
    %c0_7 = arith.constant 0 : index
    %10 = vector.load %arg5[%c0_6, %c0_7] : memref<8x1xf32, #tpu.memory_space<vmem>>, vector<8x1xf32>
    tpu.vector_store %arg5[%c0_6, %c0_7], %9 {strides = array<i32>} : memref<8x1xf32, #tpu.memory_space<vmem>>, vector<8x1xf32>,
    %c0_8 = arith.constant 0 : index
    %c0_9 = arith.constant 0 : index
    %11 = vector.load %arg6[%c0_8, %c0_9] : memref<8x1xf32, #tpu.memory_space<vmem>>, vector<8x1xf32>
    %12 = arith.mulf %3, %3 : vector<8x128xf32>
    %cst_10 = arith.constant dense<0.000000e+00> : vector<8xf32>
    %13 = vector.multi_reduction <add>, %12, %cst_10 [1] : vector<8x128xf32> to vector<8xf32>
    %14 = vector.shape_cast %13 : vector<8xf32> to vector<8x1xf32>
    %15 = arith.addf %11, %14 : vector<8x1xf32>
    %c0_11 = arith.constant 0 : index
    %c0_12 = arith.constant 0 : index
    %16 = vector.load %arg6[%c0_11, %c0_12] : memref<8x1xf32, #tpu.memory_space<vmem>>, vector<8x1xf32>
    tpu.vector_store %arg6[%c0_11, %c0_12], %15 {strides = array<i32>} : memref<8x1xf32, #tpu.memory_space<vmem>>, vector<8x1xf32>,
    %c0_13 = arith.constant 0 : index
    %c0_14 = arith.constant 0 : index
    %17 = vector.load %arg7[%c0_13, %c0_14] : memref<8x1xf32, #tpu.memory_space<vmem>>, vector<8x1xf32>
    %18 = arith.mulf %4, %4 : vector<8x128xf32>
    %cst_15 = arith.constant dense<0.000000e+00> : vector<8xf32>
    %19 = vector.multi_reduction <add>, %18, %cst_15 [1] : vector<8x128xf32> to vector<8xf32>
    %20 = vector.shape_cast %19 : vector<8xf32> to vector<8x1xf32>
    %21 = arith.addf %17, %20 : vector<8x1xf32>
    %c0_16 = arith.constant 0 : index
    %c0_17 = arith.constant 0 : index
    %22 = vector.load %arg7[%c0_16, %c0_17] : memref<8x1xf32, #tpu.memory_space<vmem>>, vector<8x1xf32>
    tpu.vector_store %arg7[%c0_16, %c0_17], %21 {strides = array<i32>} : memref<8x1xf32, #tpu.memory_space<vmem>>, vector<8x1xf32>,
    %c0_i32_18 = arith.constant 0 : i32
    %23 = arith.cmpi eq, %arg1, %c0_i32_18 : i32
    %24 = arith.extui %23 : i1 to i32
    %c0_i32_19 = arith.constant 0 : i32
    %25 = arith.cmpi ne, %24, %c0_i32_19 : i32
    scf.if %25 {
      %c0_20 = arith.constant 0 : index
      %c0_21 = arith.constant 0 : index
      %26 = vector.load %arg6[%c0_20, %c0_21] : memref<8x1xf32, #tpu.memory_space<vmem>>, vector<8x1xf32>
      %cst_22 = arith.constant 1.000000e-16 : f32
      %27 = vector.broadcast %cst_22 : f32 to vector<8x1xf32>
      %28 = arith.maximumf %26, %27 : vector<8x1xf32>
      %c0_23 = arith.constant 0 : index
      %c0_24 = arith.constant 0 : index
      %29 = vector.load %arg7[%c0_23, %c0_24] : memref<8x1xf32, #tpu.memory_space<vmem>>, vector<8x1xf32>
      %cst_25 = arith.constant 1.000000e-16 : f32
      %30 = vector.broadcast %cst_25 : f32 to vector<8x1xf32>
      %31 = arith.maximumf %29, %30 : vector<8x1xf32>
      %32 = arith.mulf %28, %31 : vector<8x1xf32>
      %c0_26 = arith.constant 0 : index
      %c0_27 = arith.constant 0 : index
      %33 = vector.load %arg5[%c0_26, %c0_27] : memref<8x1xf32, #tpu.memory_space<vmem>>, vector<8x1xf32>
      %34 = math.rsqrt %32 : vector<8x1xf32>
      %35 = arith.mulf %33, %34 : vector<8x1xf32>
      %c0_28 = arith.constant 0 : index
      %c0_29 = arith.constant 0 : index
      %36 = vector.load %arg4[%c0_28, %c0_29] : memref<8x1xf32, #tpu.memory_space<vmem>>, vector<8x1xf32>
      tpu.vector_store %arg4[%c0_28, %c0_29], %35 {strides = array<i32>} : memref<8x1xf32, #tpu.memory_space<vmem>>, vector<8x1xf32>,
    } else {
    }
    return
  }
  func.func @transform_0(%arg0: i32, %arg1: i32) -> (i32, i32) {
    %c0_i32 = arith.constant 0 : i32
    return %arg0, %arg1 : i32, i32
  }
  func.func @transform_1(%arg0: i32, %arg1: i32) -> (i32, i32) {
    %c0_i32 = arith.constant 0 : i32
    return %arg0, %arg1 : i32, i32
  }
  func.func @transform_2(%arg0: i32, %arg1: i32) -> (i32, i32) {
    %c0_i32 = arith.constant 0 : i32
    %c0_i32_0 = arith.constant 0 : i32
    return %arg0, %c0_i32 : i32, i32
  }
}

</mosaic_0001>

<llo_original>
// kernel: tpu_custom_call.1
$region0: #{tpu_custom_call.1}
  #allocation0 [shape = 'u32[]', space=smem, size = 0x4, offset = 0x4, fixed_abs, tag = 'smem constant byte address 0x4 - core index']
  #allocation1 [shape = 'u32[144,128]{1,0:T(1,128)}', space=vmem, size = 0x12000, scoped, tag = 'internal scratch']
  #allocation2 [shape = 'f32[8,1]{1,0:T(8,128)}', space=vmem, size = 0x1000, scoped, tag = 'scratch operand']
  #allocation3 [shape = 'f32[8,1]{1,0:T(8,128)}', space=vmem, size = 0x1000, scoped, tag = 'scratch operand']
  #allocation4 [shape = 'f32[8,1]{1,0:T(8,128)}', space=vmem, size = 0x1000, scoped, tag = 'scratch operand']
  %s0 = inlined_call_operand.hbm [shape: f32[8,128], index: 0, kind: input, shape index: {}]
  %s1 = inlined_call_operand.hbm [shape: f32[8,128], index: 1, kind: input, shape index: {}]
  %s2 = inlined_call_operand.vmem [shape: f32[8,1], index: 2, kind: output, shape index: {}]
  %s3 = sld [smem:[#allocation0]]
  $region34: #{tpu_custom_call.1} parent=0
    _
  %s5 = ssub.s32 1, %s3
  %s6 = scalar_select 0, %s5, %s3
  $region1: #{tpu_custom_call.1} parent=0
    #allocation5 [shape = 'u8[4096]{0}', space=vmem, size = 0x1000, scoped, tag = 'input window, operand 0, single buffered']
    #allocation6 [shape = 's32[1]{0}', space=sflag, size = 0x4, scoped, tag = 'scoped memory for tpu_custom_call.1']
    #allocation7 [shape = 'u8[4096]{0}', space=vmem, size = 0x1000, scoped, tag = 'input window, operand 1, single buffered']
    #allocation8 [shape = 's32[1]{0}', space=sflag, size = 0x4, scoped, tag = 'scoped memory for tpu_custom_call.1']
    %7 = vsyncpa [#allocation6], 0
    %8 = vsyncpa [#allocation8], 0
    // Predicated region
    $region2: #{tpu_custom_call.1} parent=1 // pred_check
      _
    $region3: #{tpu_custom_call.1} parent=1 // pred_check_branch
      %10 = sbr.rel (0) target = $region5
    $region4: #{tpu_custom_call.1} parent=1 // pred_region
      %s12 = ssub.s32 128, 128
      %13 = vsyncadd [#allocation6], %s12
      %s15 = sshll.u32 [#allocation5], 4
      %s16 = int_to_ptr.vmem [resolvable:$true] %s15
      %18 = dma.hbm_to_vmem [thread:$0]  %s0, 128, %s16, [#allocation6]
    $region5: #{tpu_custom_call.1} parent=1 // pred_fallthru
      _
    // Predicated region
    $region6: #{tpu_custom_call.1} parent=1 // pred_check
      _
    $region7: #{tpu_custom_call.1} parent=1 // pred_check_branch
      %20 = sbr.rel (0) target = $region9
    $region8: #{tpu_custom_call.1} parent=1 // pred_region
      %s22 = ssub.s32 128, 128
      %23 = vsyncadd [#allocation8], %s22
      %s25 = sshll.u32 [#allocation7], 4
      %s26 = int_to_ptr.vmem [resolvable:$true] %s25
      %28 = dma.hbm_to_vmem [thread:$0]  %s1, 128, %s26, [#allocation8]
    $region9: #{tpu_custom_call.1} parent=1 // pred_fallthru
      _
    // Predicated region
    $region10: #{tpu_custom_call.1} parent=1 // pred_check
      _
    $region11: #{tpu_custom_call.1} parent=1 // pred_check_branch
      %30 = sbr.rel (0) target = $region13
    $region12: #{tpu_custom_call.1} parent=1 // pred_region
      %31 = dma.done [#allocation6], 128
    $region13: #{tpu_custom_call.1} parent=1 // pred_fallthru
      _
    // Predicated region
    $region14: #{tpu_custom_call.1} parent=1 // pred_check
      _
    $region15: #{tpu_custom_call.1} parent=1 // pred_check_branch
      %33 = sbr.rel (0) target = $region17
    $region16: #{tpu_custom_call.1} parent=1 // pred_region
      %34 = dma.done [#allocation8], 128
    $region17: #{tpu_custom_call.1} parent=1 // pred_fallthru
      _
    %p35 = scmp.eq.s32.totalorder 0, 0
    // Predicated region
    $region18: #{tpu_custom_call.1} parent=1 // pred_check
      %p36 = pneg %p35
    $region19: #{tpu_custom_call.1} parent=1 // pred_check_branch
      %38 = sbr.rel (%p36) target = $region21
    $region20: #{tpu_custom_call.1} parent=1 // pred_region
      %vm39 = vcmask 7168
      %40 = vst.msk [vmem:[#allocation2] sm:$0xff] %vm39, 0.0
      %41 = vst.msk [vmem:[#allocation3] sm:$0xff] %vm39, 0.0
      %42 = vst.msk [vmem:[#allocation4] sm:$0xff] %vm39, 0.0
    $region21: #{tpu_custom_call.1} parent=1 // pred_fallthru
      _
    %v43 = vld [vmem:[#allocation5] sm:$0xff]
    %v44 = vld [vmem:[#allocation7] sm:$0xff]
    %v45 = vld [vmem:[#allocation2] sm:$0xff]
    %v46 = vmul.f32 %v43, %v44
    %47 = vadd.xlane.f32.xlu0 %v46
    %v48 = vpop.xlane.xlu0 %47
    %v49 = vadd.f32 %v45, %v48
    %vm50 = vcmask 7168
    %51 = vst.msk [vmem:[#allocation2] sm:$0xff] %vm50, %v49
    %v52 = vld [vmem:[#allocation3] sm:$0xff]
    %v53 = vmul.f32 %v43, %v43
    %54 = vadd.xlane.f32.xlu0 %v53
    %v55 = vpop.xlane.xlu0 %54
    %v56 = vadd.f32 %v52, %v55
    %57 = vst.msk [vmem:[#allocation3] sm:$0xff] %vm50, %v56
    %v58 = vld [vmem:[#allocation4] sm:$0xff]
    %v59 = vmul.f32 %v44, %v44
    %60 = vadd.xlane.f32.xlu0 %v59
    %v61 = vpop.xlane.xlu0 %60
    %v62 = vadd.f32 %v58, %v61
    %63 = vst.msk [vmem:[#allocation4] sm:$0xff] %vm50, %v62
    // Predicated region
    $region22: #{tpu_custom_call.1} parent=1 // pred_check
      %p64 = pneg %p35
    $region23: #{tpu_custom_call.1} parent=1 // pred_check_branch
      %66 = sbr.rel (%p64) target = $region25
    $region24: #{tpu_custom_call.1} parent=1 // pred_region
      %v67 = vld [vmem:[#allocation3] sm:$0xff]
      %v68 = vmax.f32 %v67, 1e-16
      %v69 = vld [vmem:[#allocation4] sm:$0xff]
      %v70 = vmax.f32 %v69, 1e-16
      %v71 = vmul.f32 %v68, %v70
      %v72 = vld [vmem:[#allocation2] sm:$0xff]
      %v73 = vrsqrt.pop %v71
      %v74 = vmul.f32 %v72, %v73
      %75 = vst.msk [vmem:[%s2] sm:$0xff] %vm50, %v74
    $region25: #{tpu_custom_call.1} parent=1 // pred_fallthru
      _
    // Predicated region
    $region26: #{tpu_custom_call.1} parent=1 // pred_check
      _
    $region27: #{tpu_custom_call.1} parent=1 // pred_check_branch
      %77 = sbr.rel (0) target = $region29
    $region28: #{tpu_custom_call.1} parent=1 // pred_region
      _
    $region29: #{tpu_custom_call.1} parent=1 // pred_fallthru
      _
    // Predicated region
    $region30: #{tpu_custom_call.1} parent=1 // pred_check
      _
    $region31: #{tpu_custom_call.1} parent=1 // pred_check_branch
      %79 = sbr.rel (0) target = $region33
    $region32: #{tpu_custom_call.1} parent=1 // pred_region
      _
    $region33: #{tpu_custom_call.1} parent=1 // pred_fallthru
      _
    %80 = vsyncpa [#allocation6], 1
    %81 = vsyncpa [#allocation8], 1

</llo_original>
